<compile_context>
chip_gen: v5e
topology: v5e:2x2
jax: 0.10.0
libtpu: 0.0.40
codegen_flags: <defaults>
</compile_context>

<pallas_src>
import jax
import jax.numpy as jnp
from jax import lax
from jax.experimental import pallas as pl
from jax.experimental.pallas import tpu as pltpu


def _round_up(n, m):
    return (n + m - 1) // m * m


def make_cnn_kernel(B, L1p, L2p, P2c, L3p, P3):
    """Build the fused kernel with all sizes baked in as Python ints.

    Ref shapes:
      x1_ref : (B*L1p, 60)   im2col'd, zero-padded input (layer-1 patches)
      w1_ref : (60, 32)      packed conv1 weight, BN scale folded
      w2_ref : (96, 64)      packed conv2 weight, BN scale folded
      w3_ref : (192, 128)    packed conv3 weight, BN scale folded
      sh_ref : (3, 128)      per-layer BN/bias shifts (rows 0/1/2, zero padded)
      wl_ref : (P3, 128)     linear weight rearranged to (time, channel)
      out    : (B, 1)
    """
    def kernel(x1_ref, w1_ref, w2_ref, w3_ref, sh_ref, wl_ref, out_ref):
        sh = sh_ref[...]                                   # one load, sliced below
        t1 = sh[0:1, 0:32]
        t2 = sh[1:2, 0:64]
        t3 = sh[2:3, :]

        # ---- conv1 (im2col matmul) + shift + ReLU -> (B, L1p, 32) ----
        h1 = jnp.dot(x1_ref[...], w1_ref[...],
                     preferred_element_type=jnp.float32)   # (B*L1p, 32)
        h1 = jnp.maximum(h1 + t1, 0.0).reshape(B, L1p, 32)  # L1p % 8 == 0

        # ---- conv2: lane-axis im2col concat + one matmul -> (B, L2p, 64) ----
        x2 = jnp.concatenate(
            [h1[:, 0:L2p, :], h1[:, 1:L2p + 1, :], h1[:, 2:L2p + 2, :]], axis=2)
        h2 = jnp.dot(x2.reshape(B * L2p, 96), w2_ref[...],
                     preferred_element_type=jnp.float32)
        h2 = jnp.maximum(h2 + t2, 0.0).reshape(B, L2p, 64)   # L2p % 8 == 0

        # ---- MaxPool1d(kernel=3, stride=3) -> (B, P2c, 64) ----
        p2 = jnp.max(h2[:, :3 * P2c, :].reshape(B, P2c, 3, 64), axis=2)

        # ---- conv3: lane-axis im2col concat + one matmul -> (B, L3p, 128) ----
        x3 = jnp.concatenate(
            [p2[:, 0:L3p, :], p2[:, 1:L3p + 1, :], p2[:, 2:L3p + 2, :]], axis=2)
        h3 = jnp.dot(x3.reshape(B * L3p, 192), w3_ref[...],
                     preferred_element_type=jnp.float32)
        h3 = jnp.maximum(h3 + t3, 0.0).reshape(B, L3p, 128)  # L3p % 8 == 0

        # ---- MaxPool1d(kernel=3, stride=1) over the valid rows -> (B, P3, 128) ----
        p3 = jnp.maximum(jnp.maximum(h3[:, 0:P3, :], h3[:, 1:P3 + 1, :]),
                         h3[:, 2:P3 + 2, :])

        # ---- Linear (bias=False): elementwise mult + 2 reductions, one store ----
        prod = p3 * wl_ref[...][None, :, :]                 # (B, P3, 128)
        out_ref[...] = jnp.sum(jnp.sum(prod, axis=2), axis=1, keepdims=True)

    return kernel


def _fold_conv_bn(w_oik, bias, gamma, beta, mean, var, eps=1e-5):
    """Fold eval-mode BN (+ conv bias) into (packed im2col weight, shift).

    Returns w_packed of shape (K*Cin, Cout) with the BN scale folded in
    (row index = k*Cin + i), and shift of shape (Cout,).
    """
    scale = gamma / jnp.sqrt(var + eps)                    # (Cout,)
    shift = beta + (bias - mean) * scale                   # (Cout,)
    cout, cin, k = w_oik.shape
    w_kic = jnp.transpose(w_oik, (2, 1, 0)).reshape(k * cin, cout)
    return (w_kic * scale[None, :]).astype(jnp.float32), shift.astype(jnp.float32)


@jax.jit
def cnn_forward(x_ncl, p):
    """x_ncl: (B, 20, L) float32, PyTorch NCL layout."""
    B, Cin, L = x_ncl.shape

    # Valid (module) lengths.
    L1, L2 = L - 2, L - 4
    P2 = (L2 - 3) // 3 + 1
    L3 = P2 - 2
    P3 = L3 - 2
    assert P3 >= 1 and P3 == (L - 7) // 3 - 3, (L, P3)

    # Padded/computed lengths: tail rows are garbage (finite) and are never
    # consumed by any valid output position; they only exist so every flatten
    # is (8,128)-tile aligned.
    L3p = _round_up(L3, 8)            # conv3 computed rows
    P2c = L3p + 2                     # pool1 computed rows
    L2p = _round_up(max(L2, 3 * P2c), 8)   # conv2 computed rows
    L1p = _round_up(L2p + 2, 8)            # conv1 computed rows
    Lpad = L1p + 2                          # zero-padded input length

    # ---- wrapper-side data plumbing (pure XLA, one time) ----
    x_nlc = jnp.transpose(x_ncl, (0, 2, 1)).astype(jnp.float32)   # (B, L, 20)
    xp = jnp.pad(x_nlc, ((0, 0), (0, Lpad - L), (0, 0)))          # (B, Lpad, 20)
    x1 = jnp.concatenate(
        [xp[:, 0:L1p, :], xp[:, 1:L1p + 1, :], xp[:, 2:L1p + 2, :]], axis=2)
    x1 = x1.reshape(B * L1p, 3 * Cin)                             # (B*L1p, 60)

    w1, t1 = _fold_conv_bn(p['w1'], p['b1'], p['g1'], p['be1'], p['m1'], p['v1'])
    w2, t2 = _fold_conv_bn(p['w2'], p['b2'], p['g2'], p['be2'], p['m2'], p['v2'])
    w3, t3 = _fold_conv_bn(p['w3'], p['b3'], p['g3'], p['be3'], p['m3'], p['v3'])

    shifts = jnp.zeros((3, 128), jnp.float32)
    shifts = shifts.at[0, :32].set(t1).at[1, :64].set(t2).at[2, :].set(t3)

    # PyTorch flattens (B, C=128, T=P3) row-major -> index = c*P3 + t.
    # Rearrange linear weight (1, 128*P3) -> (128, P3) -> (P3, 128).
    wl_tc = jnp.transpose(p['wl'].reshape(128, P3), (1, 0)).astype(jnp.float32)

    kernel = make_cnn_kernel(B, L1p, L2p, P2c, L3p, P3)
    vmem = pltpu.MemorySpace.VMEM
    return pl.pallas_call(
        kernel,
        out_shape=jax.ShapeDtypeStruct((B, 1), jnp.float32),
        in_specs=[pl.BlockSpec(memory_space=vmem)] * 6,
        out_specs=pl.BlockSpec(memory_space=vmem),
    )(x1, w1, w2, w3, shifts, wl_tc)


def reference_forward(x_ncl, p, eps=1e-5):
    """Pure-JAX reference reproducing the PyTorch module (eval-mode BN)."""
    def conv_bn_relu(x, w, b, g, be, m, v):
        y = lax.conv_general_dilated(x, w, (1,), 'VALID',
                                     dimension_numbers=('NCH', 'OIH', 'NCH'))
        y = y + b[None, :, None]
        y = ((y - m[None, :, None]) / jnp.sqrt(v[None, :, None] + eps)
             * g[None, :, None] + be[None, :, None])
        return jnp.maximum(y, 0.0)

    def maxpool(x, k, s):
        return lax.reduce_window(x, -jnp.inf, lax.max, (1, 1, k), (1, 1, s), 'VALID')

    h = conv_bn_relu(x_ncl, p['w1'], p['b1'], p['g1'], p['be1'], p['m1'], p['v1'])
    h = conv_bn_relu(h, p['w2'], p['b2'], p['g2'], p['be2'], p['m2'], p['v2'])
    h = maxpool(h, 3, 3)
    h = conv_bn_relu(h, p['w3'], p['b3'], p['g3'], p['be3'], p['m3'], p['v3'])
    h = maxpool(h, 3, 1)
    flat = h.reshape(x_ncl.shape[0], -1)
    return flat @ p['wl'].T


def make_params(key, L):
    """Deterministic synthetic parameters with the module's shapes."""
    P3 = (L - 7) // 3 - 3
    linear_size = 128 * P3
    ks = jax.random.split(key, 16)

    def bn(k, c):
        a, b, c_, d = jax.random.split(k, 4)
        return (1.0 + 0.1 * jax.random.normal(a, (c,)),            # gamma
                0.1 * jax.random.normal(b, (c,)),                   # beta
                0.1 * jax.random.normal(c_, (c,)),                  # running mean
                1.0 + 0.05 * jnp.abs(jax.random.normal(d, (c,))))   # running var

    p = {}
    p['w1'] = 0.1 * jax.random.normal(ks[0], (32, 20, 3))
    p['b1'] = 0.1 * jax.random.normal(ks[1], (32,))
    p['g1'], p['be1'], p['m1'], p['v1'] = bn(ks[2], 32)
    p['w2'] = 0.1 * jax.random.normal(ks[3], (64, 32, 3))
    p['b2'] = 0.1 * jax.random.normal(ks[4], (64,))
    p['g2'], p['be2'], p['m2'], p['v2'] = bn(ks[5], 64)
    p['w3'] = 0.1 * jax.random.normal(ks[6], (128, 64, 3))
    p['b3'] = 0.1 * jax.random.normal(ks[7], (128,))
    p['g3'], p['be3'], p['m3'], p['v3'] = bn(ks[8], 128)
    p['wl'] = 0.05 * jax.random.normal(ks[9], (1, linear_size))
    return {k: v.astype(jnp.float32) for k, v in p.items()}


if __name__ == "__main__":
    key = jax.random.PRNGKey(0)
    B, Cin, L = 2, 20, 25            # input_size = 25 -> final pooled length 3
    k_x, k_p = jax.random.split(key)
    x = jax.random.normal(k_x, (B, Cin, L), jnp.float32)   # PyTorch NCL input
    params = make_params(k_p, L)

    out = cnn_forward(x, params)
    out = jax.block_until_ready(out)

    ref = reference_forward(x, params)
    assert out.shape == (B, 1), out.shape
    assert jnp.allclose(out, ref, rtol=1e-4, atol=1e-4), (out, ref)
    print("KERNEL_OK")
</pallas_src>

<mosaic_0001>
module attributes {stable_mosaic.version = 11 : i64} {
  func.func @kernel(%arg0: memref<80x60xf32, #tpu.memory_space<vmem>>, %arg1: memref<60x32xf32, #tpu.memory_space<vmem>>, %arg2: memref<96x64xf32, #tpu.memory_space<vmem>>, %arg3: memref<192x128xf32, #tpu.memory_space<vmem>>, %arg4: memref<3x128xf32, #tpu.memory_space<vmem>>, %arg5: memref<3x128xf32, #tpu.memory_space<vmem>>, %arg6: memref<2x1xf32, #tpu.memory_space<vmem>>) attributes {dimension_semantics = [], scalar_prefetch = 0 : i64, scratch_operands = 0 : i64, tpu.core_type = #tpu.core_type<tc>} {
    %c0 = arith.constant 0 : index
    %c0_0 = arith.constant 0 : index
    %0 = vector.load %arg4[%c0, %c0_0] : memref<3x128xf32, #tpu.memory_space<vmem>>, vector<3x128xf32>
    %1 = vector.extract_strided_slice %0 {offsets = [0, 0], sizes = [1, 32], strides = [1, 1]} : vector<3x128xf32> to vector<1x32xf32>
    %2 = vector.extract_strided_slice %0 {offsets = [1, 0], sizes = [1, 64], strides = [1, 1]} : vector<3x128xf32> to vector<1x64xf32>
    %3 = vector.extract_strided_slice %0 {offsets = [2, 0], sizes = [1, 128], strides = [1, 1]} : vector<3x128xf32> to vector<1x128xf32>
    %c0_1 = arith.constant 0 : index
    %c0_2 = arith.constant 0 : index
    %4 = vector.load %arg0[%c0_1, %c0_2] : memref<80x60xf32, #tpu.memory_space<vmem>>, vector<80x60xf32>
    %c0_3 = arith.constant 0 : index
    %c0_4 = arith.constant 0 : index
    %5 = vector.load %arg1[%c0_3, %c0_4] : memref<60x32xf32, #tpu.memory_space<vmem>>, vector<60x32xf32>
    %cst = arith.constant dense<0.000000e+00> : vector<80x32xf32>
    %6 = tpu.matmul %4, %5, %cst {dimension_numbers = #tpu.dot_dimension_numbers<[1], [0], [0], [1], [0, 0, 1, 1], [], []>} : vector<80x60xf32>, vector<60x32xf32>, vector<80x32xf32> -> vector<80x32xf32>
    %7 = vector.broadcast %1 : vector<1x32xf32> to vector<80x32xf32>
    %8 = arith.addf %6, %7 : vector<80x32xf32>
    %cst_5 = arith.constant 0.000000e+00 : f32
    %9 = vector.broadcast %cst_5 : f32 to vector<80x32xf32>
    %10 = arith.maximumf %8, %9 : vector<80x32xf32>
    %11 = vector.shape_cast %10 : vector<80x32xf32> to vector<2x40x32xf32>
    %12 = vector.extract_strided_slice %11 {offsets = [0, 0, 0], sizes = [2, 32, 32], strides = [1, 1, 1]} : vector<2x40x32xf32> to vector<2x32x32xf32>
    %13 = vector.extract_strided_slice %11 {offsets = [0, 1, 0], sizes = [2, 32, 32], strides = [1, 1, 1]} : vector<2x40x32xf32> to vector<2x32x32xf32>
    %14 = vector.extract_strided_slice %11 {offsets = [0, 2, 0], sizes = [2, 32, 32], strides = [1, 1, 1]} : vector<2x40x32xf32> to vector<2x32x32xf32>
    %15 = tpu.concatenate %12, %13, %14 in 2 : vector<2x32x32xf32>, vector<2x32x32xf32>, vector<2x32x32xf32> -> vector<2x32x96xf32>
    %16 = vector.shape_cast %15 : vector<2x32x96xf32> to vector<64x96xf32>
    %c0_6 = arith.constant 0 : index
    %c0_7 = arith.constant 0 : index
    %17 = vector.load %arg2[%c0_6, %c0_7] : memref<96x64xf32, #tpu.memory_space<vmem>>, vector<96x64xf32>
    %cst_8 = arith.constant dense<0.000000e+00> : vector<64x64xf32>
    %18 = tpu.matmul %16, %17, %cst_8 {dimension_numbers = #tpu.dot_dimension_numbers<[1], [0], [0], [1], [0, 0, 1, 1], [], []>} : vector<64x96xf32>, vector<96x64xf32>, vector<64x64xf32> -> vector<64x64xf32>
    %19 = vector.broadcast %2 : vector<1x64xf32> to vector<64x64xf32>
    %20 = arith.addf %18, %19 : vector<64x64xf32>
    %cst_9 = arith.constant 0.000000e+00 : f32
    %21 = vector.broadcast %cst_9 : f32 to vector<64x64xf32>
    %22 = arith.maximumf %20, %21 : vector<64x64xf32>
    %23 = vector.shape_cast %22 : vector<64x64xf32> to vector<2x32x64xf32>
    %24 = vector.extract_strided_slice %23 {offsets = [0, 0, 0], sizes = [2, 30, 64], strides = [1, 1, 1]} : vector<2x32x64xf32> to vector<2x30x64xf32>
    %25 = vector.shape_cast %24 : vector<2x30x64xf32> to vector<2x10x3x64xf32>
    %cst_10 = arith.constant dense<0xFF800000> : vector<2x10x64xf32>
    %26 = vector.multi_reduction <maximumf>, %25, %cst_10 [2] : vector<2x10x3x64xf32> to vector<2x10x64xf32>
    %27 = vector.extract_strided_slice %26 {offsets = [0, 0, 0], sizes = [2, 8, 64], strides = [1, 1, 1]} : vector<2x10x64xf32> to vector<2x8x64xf32>
    %28 = vector.extract_strided_slice %26 {offsets = [0, 1, 0], sizes = [2, 8, 64], strides = [1, 1, 1]} : vector<2x10x64xf32> to vector<2x8x64xf32>
    %29 = vector.extract_strided_slice %26 {offsets = [0, 2, 0], sizes = [2, 8, 64], strides = [1, 1, 1]} : vector<2x10x64xf32> to vector<2x8x64xf32>
    %30 = tpu.concatenate %27, %28, %29 in 2 : vector<2x8x64xf32>, vector<2x8x64xf32>, vector<2x8x64xf32> -> vector<2x8x192xf32>
    %31 = vector.shape_cast %30 : vector<2x8x192xf32> to vector<16x192xf32>
    %c0_11 = arith.constant 0 : index
    %c0_12 = arith.constant 0 : index
    %32 = vector.load %arg3[%c0_11, %c0_12] : memref<192x128xf32, #tpu.memory_space<vmem>>, vector<192x128xf32>
    %cst_13 = arith.constant dense<0.000000e+00> : vector<16x128xf32>
    %33 = tpu.matmul %31, %32, %cst_13 {dimension_numbers = #tpu.dot_dimension_numbers<[1], [0], [0], [1], [0, 0, 1, 1], [], []>} : vector<16x192xf32>, vector<192x128xf32>, vector<16x128xf32> -> vector<16x128xf32>
    %34 = vector.broadcast %3 : vector<1x128xf32> to vector<16x128xf32>
    %35 = arith.addf %33, %34 : vector<16x128xf32>
    %cst_14 = arith.constant 0.000000e+00 : f32
    %36 = vector.broadcast %cst_14 : f32 to vector<16x128xf32>
    %37 = arith.maximumf %35, %36 : vector<16x128xf32>
    %38 = vector.shape_cast %37 : vector<16x128xf32> to vector<2x8x128xf32>
    %39 = vector.extract_strided_slice %38 {offsets = [0, 0, 0], sizes = [2, 3, 128], strides = [1, 1, 1]} : vector<2x8x128xf32> to vector<2x3x128xf32>
    %40 = vector.extract_strided_slice %38 {offsets = [0, 1, 0], sizes = [2, 3, 128], strides = [1, 1, 1]} : vector<2x8x128xf32> to vector<2x3x128xf32>
    %41 = arith.maximumf %39, %40 : vector<2x3x128xf32>
    %42 = vector.extract_strided_slice %38 {offsets = [0, 2, 0], sizes = [2, 3, 128], strides = [1, 1, 1]} : vector<2x8x128xf32> to vector<2x3x128xf32>
    %43 = arith.maximumf %41, %42 : vector<2x3x128xf32>
    %c0_15 = arith.constant 0 : index
    %c0_16 = arith.constant 0 : index
    %44 = vector.load %arg5[%c0_15, %c0_16] : memref<3x128xf32, #tpu.memory_space<vmem>>, vector<3x128xf32>
    %45 = vector.shape_cast %44 : vector<3x128xf32> to vector<1x3x128xf32>
    %46 = vector.broadcast %45 : vector<1x3x128xf32> to vector<2x3x128xf32>
    %47 = arith.mulf %43, %46 : vector<2x3x128xf32>
    %cst_17 = arith.constant dense<0.000000e+00> : vector<2x3xf32>
    %48 = vector.multi_reduction <add>, %47, %cst_17 [2] : vector<2x3x128xf32> to vector<2x3xf32>
    %cst_18 = arith.constant dense<0.000000e+00> : vector<2xf32>
    %49 = vector.multi_reduction <add>, %48, %cst_18 [1] : vector<2x3xf32> to vector<2xf32>
    %50 = vector.shape_cast %49 : vector<2xf32> to vector<2x1xf32>
    %c0_19 = arith.constant 0 : index
    %c0_20 = arith.constant 0 : index
    %51 = vector.load %arg6[%c0_19, %c0_20] : memref<2x1xf32, #tpu.memory_space<vmem>>, vector<2x1xf32>
    tpu.vector_store %arg6[%c0_19, %c0_20], %50 {strides = array<i32>} : memref<2x1xf32, #tpu.memory_space<vmem>>, vector<2x1xf32>,
    return
  }
}

</mosaic_0001>

<llo_original>
// kernel: cnn_forward.1
$region0: #{cnn_forward.1}
  #allocation0 [shape = 'u32[]', space=smem, size = 0x4, offset = 0x4, fixed_abs, tag = 'smem constant byte address 0x4 - core index']
  #allocation1 [shape = 'u32[72,128]{1,0:T(1,128)}', space=vmem, size = 0x9000, scoped, tag = 'internal scratch']
  %s0 = inlined_call_operand.vmem [shape: f32[80,60], index: 0, kind: input, shape index: {}]
  %s1 = inlined_call_operand.vmem [shape: f32[60,32], index: 1, kind: input, shape index: {}]
  %s2 = inlined_call_operand.vmem [shape: f32[96,64], index: 2, kind: input, shape index: {}]
  %s3 = inlined_call_operand.vmem [shape: f32[192,128], index: 3, kind: input, shape index: {}]
  %s4 = inlined_call_operand.vmem [shape: f32[3,128], index: 4, kind: input, shape index: {}]
  %s5 = inlined_call_operand.vmem [shape: f32[3,128], index: 5, kind: input, shape index: {}]
  %s6 = inlined_call_operand.vmem [shape: f32[2,1], index: 6, kind: output, shape index: {}]
  %s7 = sld [smem:[#allocation0]]
  $region34: #{cnn_forward.1} parent=0
    _
  %s9 = ssub.s32 1, %s7
  %s10 = scalar_select 0, %s9, %s7
  // Predicated region
  $region2: #{cnn_forward.1} parent=0 // pred_check
    _
  $region3: #{cnn_forward.1} parent=0 // pred_check_branch
    %12 = sbr.rel (0) target = $region5
  $region4: #{cnn_forward.1} parent=0 // pred_region
    _
  $region5: #{cnn_forward.1} parent=0 // pred_fallthru
    _
  // Predicated region
  $region6: #{cnn_forward.1} parent=0 // pred_check
    _
  $region7: #{cnn_forward.1} parent=0 // pred_check_branch
    %14 = sbr.rel (0) target = $region9
  $region8: #{cnn_forward.1} parent=0 // pred_region
    _
  $region9: #{cnn_forward.1} parent=0 // pred_fallthru
    _
  // Predicated region
  $region10: #{cnn_forward.1} parent=0 // pred_check
    _
  $region11: #{cnn_forward.1} parent=0 // pred_check_branch
    %16 = sbr.rel (0) target = $region13
  $region12: #{cnn_forward.1} parent=0 // pred_region
    _
  $region13: #{cnn_forward.1} parent=0 // pred_fallthru
    _
  // Predicated region
  $region14: #{cnn_forward.1} parent=0 // pred_check
    _
  $region15: #{cnn_forward.1} parent=0 // pred_check_branch
    %18 = sbr.rel (0) target = $region17
  $region16: #{cnn_forward.1} parent=0 // pred_region
    _
  $region17: #{cnn_forward.1} parent=0 // pred_fallthru
    _
  // Predicated region
  $region18: #{cnn_forward.1} parent=0 // pred_check
    _
  $region19: #{cnn_forward.1} parent=0 // pred_check_branch
    %20 = sbr.rel (0) target = $region21
  $region20: #{cnn_forward.1} parent=0 // pred_region
    _
  $region21: #{cnn_forward.1} parent=0 // pred_fallthru
    _
  // Predicated region
  $region22: #{cnn_forward.1} parent=0 // pred_check
    _
  $region23: #{cnn_forward.1} parent=0 // pred_check_branch
    %22 = sbr.rel (0) target = $region25
  $region24: #{cnn_forward.1} parent=0 // pred_region
    _
  $region25: #{cnn_forward.1} parent=0 // pred_fallthru
    _
  %v23 = vld [vmem:[%s4] sm:$0x7]
  %v24 = vld [vmem:[%s0] sm:$0xff]
  %v25 = vld [vmem:[%s0 + $0x8] sm:$0xff]
  %v26 = vld [vmem:[%s0 + $0x10] sm:$0xff]
  %v27 = vld [vmem:[%s0 + $0x18] sm:$0xff]
  %v28 = vld [vmem:[%s0 + $0x20] sm:$0xff]
  %v29 = vld [vmem:[%s0 + $0x28] sm:$0xff]
  %v30 = vld [vmem:[%s0 + $0x30] sm:$0xff]
  %v31 = vld [vmem:[%s0 + $0x38] sm:$0xff]
  %v32 = vld [vmem:[%s0 + $0x40] sm:$0xff]
  %v33 = vld [vmem:[%s0 + $0x48] sm:$0xff]
  %v34 = vld [vmem:[%s1] sm:$0xff]
  %v35 = vld [vmem:[%s1 + $0x8] sm:$0xff]
  %v36 = vld [vmem:[%s1 + $0x10] sm:$0xff]
  %v37 = vld [vmem:[%s1 + $0x18] sm:$0xff]
  %v38 = vld [vmem:[%s1 + $0x20] sm:$0xff]
  %v39 = vld [vmem:[%s1 + $0x28] sm:$0xff]
  %v40 = vld [vmem:[%s1 + $0x30] sm:$0xff]
  %v41 = vld [vmem:[%s1 + $0x38] sm:$0xf]
  %v42 = vperm.slane %v23, 0
  %vm43 = vcmask 490496
  %v45 = vsel %vm43, %v24, 0
  %v48 = vsel %vm43, %v25, 0
  %v51 = vsel %vm43, %v26, 0
  %v54 = vsel %vm43, %v27, 0
  %v57 = vsel %vm43, %v28, 0
  %v60 = vsel %vm43, %v29, 0
  %v63 = vsel %vm43, %v30, 0
  %v66 = vsel %vm43, %v31, 0
  %v69 = vsel %vm43, %v32, 0
  %v72 = vsel %vm43, %v33, 0
  %vm74 = vcmask 1043456
  %v76 = vsel %vm74, %v41, 0
  %78 = vmatpush.msra.mxu0 0.0
  %79 = vmatpush.msra.mxu0 0.0
  %80 = vmatpush.msra.mxu0 0.0
  %81 = vmatpush.msra.mxu0 0.0
  %82 = vmatpush.msra.mxu0 0.0
  %83 = vmatpush.msra.mxu0 0.0
  %84 = vmatpush.msra.mxu0 0.0
  %85 = vmatpush.msra.mxu0 0.0
  %86 = vmatpush.msra.mxu0 %v76
  %87 = vmatpush.msra.mxu0 %v40
  %88 = vmatpush.msra.mxu0 %v39
  %89 = vmatpush.msra.mxu0 %v38
  %90 = vmatpush.msra.mxu0 %v37
  %91 = vmatpush.msra.mxu0 %v36
  %92 = vmatpush.msra.mxu0 %v35
  %93 = vmatpush.msra.mxu0 %v34
  %94 = vmatmul.f32.gmra.mxu0 %v45
  %v95 = vpop.f32.mrf.mxu0
  %v96 = vadd.f32 %v42, %v95
  %97 = vmatmul.f32.gmra.mxu0 %v48
  %v98 = vpop.f32.mrf.mxu0
  %v99 = vadd.f32 %v42, %v98
  %100 = vmatmul.f32.gmra.mxu0 %v51
  %v101 = vpop.f32.mrf.mxu0
  %v102 = vadd.f32 %v42, %v101
  %103 = vmatmul.f32.gmra.mxu0 %v54
  %v104 = vpop.f32.mrf.mxu0
  %v105 = vadd.f32 %v42, %v104
  %106 = vmatmul.f32.gmra.mxu0 %v57
  %v107 = vpop.f32.mrf.mxu0
  %v108 = vadd.f32 %v42, %v107
  %109 = vmatmul.f32.gmra.mxu0 %v60
  %v110 = vpop.f32.mrf.mxu0
  %v111 = vadd.f32 %v42, %v110
  %112 = vmatmul.f32.gmra.mxu0 %v63
  %v113 = vpop.f32.mrf.mxu0
  %v114 = vadd.f32 %v42, %v113
  %115 = vmatmul.f32.gmra.mxu0 %v66
  %v116 = vpop.f32.mrf.mxu0
  %v117 = vadd.f32 %v42, %v116
  %118 = vmatmul.f32.gmra.mxu0 %v69
  %v119 = vpop.f32.mrf.mxu0
  %v120 = vadd.f32 %v42, %v119
  %121 = vmatmul.f32.gmra.mxu0 %v72
  %v122 = vpop.f32.mrf.mxu0
  %v123 = vadd.f32 %v42, %v122
  %124 = vdwg.mxu0
  %v125 = vmax.f32 %v96, 0.0
  %v126 = vmax.f32 %v99, 0.0
  %v127 = vmax.f32 %v102, 0.0
  %v128 = vmax.f32 %v105, 0.0
  %v129 = vmax.f32 %v108, 0.0
  %v130 = vmax.f32 %v111, 0.0
  %v131 = vmax.f32 %v114, 0.0
  %v132 = vmax.f32 %v117, 0.0
  %v133 = vmax.f32 %v120, 0.0
  %v134 = vmax.f32 %v123, 0.0
  %vm145 = vcmask 1046528
  %v146 = vrot.slane %v125, 1
  %v147 = vrot.slane %v126, 1
  %v148 = vsel %vm145, %v146, %v147
  %v149 = vrot.slane %v127, 1
  %v150 = vsel %vm145, %v147, %v149
  %v151 = vrot.slane %v128, 1
  %v152 = vsel %vm145, %v149, %v151
  %v153 = vrot.slane %v129, 1
  %v154 = vsel %vm145, %v151, %v153
  %v155 = vrot.slane %v130, 1
  %v156 = vrot.slane %v131, 1
  %v157 = vsel %vm145, %v155, %v156
  %v158 = vrot.slane %v132, 1
  %v159 = vsel %vm145, %v156, %v158
  %v160 = vrot.slane %v133, 1
  %v161 = vsel %vm145, %v158, %v160
  %v162 = vrot.slane %v134, 1
  %v163 = vsel %vm145, %v160, %v162
  %164 = vrot.lane.b32.xlu0 %v148, 32
  %v165 = vpop.permute.xlu0 %164
  %166 = vrot.lane.b32.xlu0 %v150, 32
  %v167 = vpop.permute.xlu0 %166
  %168 = vrot.lane.b32.xlu0 %v152, 32
  %v169 = vpop.permute.xlu0 %168
  %170 = vrot.lane.b32.xlu0 %v154, 32
  %v171 = vpop.permute.xlu0 %170
  %172 = vrot.lane.b32.xlu0 %v157, 32
  %v173 = vpop.permute.xlu0 %172
  %174 = vrot.lane.b32.xlu0 %v159, 32
  %v175 = vpop.permute.xlu0 %174
  %176 = vrot.lane.b32.xlu0 %v161, 32
  %v177 = vpop.permute.xlu0 %176
  %178 = vrot.lane.b32.xlu0 %v163, 32
  %v179 = vpop.permute.xlu0 %178
  %vm188 = vcmask 1045504
  %v189 = vrot.slane %v125, 2
  %v190 = vrot.slane %v126, 2
  %v191 = vsel %vm188, %v189, %v190
  %v192 = vrot.slane %v127, 2
  %v193 = vsel %vm188, %v190, %v192
  %v194 = vrot.slane %v128, 2
  %v195 = vsel %vm188, %v192, %v194
  %v196 = vrot.slane %v129, 2
  %v197 = vsel %vm188, %v194, %v196
  %v198 = vrot.slane %v130, 2
  %v199 = vrot.slane %v131, 2
  %v200 = vsel %vm188, %v198, %v199
  %v201 = vrot.slane %v132, 2
  %v202 = vsel %vm188, %v199, %v201
  %v203 = vrot.slane %v133, 2
  %v204 = vsel %vm188, %v201, %v203
  %v205 = vrot.slane %v134, 2
  %v206 = vsel %vm188, %v203, %v205
  %207 = vrot.lane.b32.xlu0 %v191, 64
  %v208 = vpop.permute.xlu0 %207
  %209 = vrot.lane.b32.xlu0 %v193, 64
  %v210 = vpop.permute.xlu0 %209
  %211 = vrot.lane.b32.xlu0 %v195, 64
  %v212 = vpop.permute.xlu0 %211
  %213 = vrot.lane.b32.xlu0 %v197, 64
  %v214 = vpop.permute.xlu0 %213
  %215 = vrot.lane.b32.xlu0 %v200, 64
  %v216 = vpop.permute.xlu0 %215
  %217 = vrot.lane.b32.xlu0 %v202, 64
  %v218 = vpop.permute.xlu0 %217
  %219 = vrot.lane.b32.xlu0 %v204, 64
  %v220 = vpop.permute.xlu0 %219
  %221 = vrot.lane.b32.xlu0 %v206, 64
  %v222 = vpop.permute.xlu0 %221
  %vm231 = vcmask 261120
  %v232 = vsel %vm231, %v125, %v165
  %v233 = vsel %vm231, %v126, %v167
  %v234 = vsel %vm231, %v127, %v169
  %v235 = vsel %vm231, %v128, %v171
  %v236 = vsel %vm231, %v130, %v173
  %v237 = vsel %vm231, %v131, %v175
  %v238 = vsel %vm231, %v132, %v177
  %v239 = vsel %vm231, %v133, %v179
  %vm240 = vcmask 523264
  %v241 = vsel %vm240, %v232, %v208
  %v242 = vsel %vm240, %v233, %v210
  %v243 = vsel %vm240, %v234, %v212
  %v244 = vsel %vm240, %v235, %v214
  %v245 = vsel %vm240, %v236, %v216
  %v246 = vsel %vm240, %v237, %v218
  %v247 = vsel %vm240, %v238, %v220
  %v248 = vsel %vm240, %v239, %v222
  %v249 = vld [vmem:[%s2] sm:$0xff]
  %v250 = vld [vmem:[%s2 + $0x8] sm:$0xff]
  %v251 = vld [vmem:[%s2 + $0x10] sm:$0xff]
  %v252 = vld [vmem:[%s2 + $0x18] sm:$0xff]
  %v253 = vld [vmem:[%s2 + $0x20] sm:$0xff]
  %v254 = vld [vmem:[%s2 + $0x28] sm:$0xff]
  %v255 = vld [vmem:[%s2 + $0x30] sm:$0xff]
  %v256 = vld [vmem:[%s2 + $0x38] sm:$0xff]
  %v257 = vld [vmem:[%s2 + $0x40] sm:$0xff]
  %v258 = vld [vmem:[%s2 + $0x48] sm:$0xff]
  %v259 = vld [vmem:[%s2 + $0x50] sm:$0xff]
  %v260 = vld [vmem:[%s2 + $0x58] sm:$0xff]
  %v261 = vperm.slane %v23, 1
  %vm262 = vcmask 785408
  %v264 = vsel %vm262, %v241, 0
  %v267 = vsel %vm262, %v242, 0
  %v270 = vsel %vm262, %v243, 0
  %v273 = vsel %vm262, %v244, 0
  %v276 = vsel %vm262, %v245, 0
  %v279 = vsel %vm262, %v246, 0
  %v282 = vsel %vm262, %v247, 0
  %v285 = vsel %vm262, %v248, 0
  %287 = vmatpush.msra.mxu0 0.0
  %288 = vmatpush.msra.mxu0 0.0
  %289 = vmatpush.msra.mxu0 0.0
  %290 = vmatpush.msra.mxu0 0.0
  %291 = vmatpush.msra.mxu0 %v260
  %292 = vmatpush.msra.mxu0 %v259
  %293 = vmatpush.msra.mxu0 %v258
  %294 = vmatpush.msra.mxu0 %v257
  %295 = vmatpush.msra.mxu0 %v256
  %296 = vmatpush.msra.mxu0 %v255
  %297 = vmatpush.msra.mxu0 %v254
  %298 = vmatpush.msra.mxu0 %v253
  %299 = vmatpush.msra.mxu0 %v252
  %300 = vmatpush.msra.mxu0 %v251
  %301 = vmatpush.msra.mxu0 %v250
  %302 = vmatpush.msra.mxu0 %v249
  %303 = vmatmul.f32.gmra.mxu0 %v264
  %v304 = vpop.f32.mrf.mxu0
  %v305 = vadd.f32 %v261, %v304
  %306 = vmatmul.f32.gmra.mxu0 %v267
  %v307 = vpop.f32.mrf.mxu0
  %v308 = vadd.f32 %v261, %v307
  %309 = vmatmul.f32.gmra.mxu0 %v270
  %v310 = vpop.f32.mrf.mxu0
  %v311 = vadd.f32 %v261, %v310
  %312 = vmatmul.f32.gmra.mxu0 %v273
  %v313 = vpop.f32.mrf.mxu0
  %v314 = vadd.f32 %v261, %v313
  %315 = vmatmul.f32.gmra.mxu0 %v276
  %v316 = vpop.f32.mrf.mxu0
  %v317 = vadd.f32 %v261, %v316
  %318 = vmatmul.f32.gmra.mxu0 %v279
  %v319 = vpop.f32.mrf.mxu0
  %v320 = vadd.f32 %v261, %v319
  %321 = vmatmul.f32.gmra.mxu0 %v282
  %v322 = vpop.f32.mrf.mxu0
  %v323 = vadd.f32 %v261, %v322
  %324 = vmatmul.f32.gmra.mxu0 %v285
  %v325 = vpop.f32.mrf.mxu0
  %v326 = vadd.f32 %v261, %v325
  %327 = vdwg.mxu0
  %v328 = vmax.f32 %v305, 0.0
  %v329 = vmax.f32 %v308, 0.0
  %v330 = vmax.f32 %v311, 0.0
  %v331 = vmax.f32 %v314, 0.0
  %v332 = vmax.f32 %v317, 0.0
  %v333 = vmax.f32 %v320, 0.0
  %v334 = vmax.f32 %v323, 0.0
  %v335 = vmax.f32 %v326, 0.0
  %v344 = vrot.slane %v328, 1
  %v345 = vrot.slane %v328, 2
  %v346 = vrot.slane %v328, 3
  %v347 = vrot.slane %v328, 4
  %v348 = vrot.slane %v328, 5
  %v349 = vrot.slane %v328, 6
  %v350 = vrot.slane %v328, 7
  %v351 = vrot.slane %v329, 1
  %v352 = vrot.slane %v329, 2
  %v353 = vrot.slane %v329, 3
  %v354 = vrot.slane %v329, 4
  %v355 = vrot.slane %v329, 5
  %v356 = vrot.slane %v329, 6
  %v357 = vrot.slane %v329, 7
  %v358 = vrot.slane %v330, 1
  %v359 = vrot.slane %v330, 2
  %v360 = vrot.slane %v330, 3
  %v361 = vrot.slane %v330, 4
  %v362 = vrot.slane %v330, 5
  %v363 = vrot.slane %v330, 6
  %v364 = vrot.slane %v330, 7
  %v365 = vrot.slane %v331, 1
  %v366 = vrot.slane %v331, 2
  %v367 = vrot.slane %v331, 3
  %v368 = vrot.slane %v331, 4
  %v369 = vrot.slane %v331, 5
  %v370 = vrot.slane %v332, 1
  %v371 = vrot.slane %v332, 2
  %v372 = vrot.slane %v332, 3
  %v373 = vrot.slane %v332, 4
  %v374 = vrot.slane %v332, 5
  %v375 = vrot.slane %v332, 6
  %v376 = vrot.slane %v332, 7
  %v377 = vrot.slane %v333, 1
  %v378 = vrot.slane %v333, 2
  %v379 = vrot.slane %v333, 3
  %v380 = vrot.slane %v333, 4
  %v381 = vrot.slane %v333, 5
  %v382 = vrot.slane %v333, 6
  %v383 = vrot.slane %v333, 7
  %v384 = vrot.slane %v334, 1
  %v385 = vrot.slane %v334, 2
  %v386 = vrot.slane %v334, 3
  %v387 = vrot.slane %v334, 4
  %v388 = vrot.slane %v334, 5
  %v389 = vrot.slane %v334, 6
  %v390 = vrot.slane %v334, 7
  %v391 = vrot.slane %v335, 1
  %v392 = vrot.slane %v335, 2
  %v393 = vrot.slane %v335, 3
  %v394 = vrot.slane %v335, 4
  %v395 = vrot.slane %v335, 5
  %396 = vst [vmem:[#allocation1] ss:$9 sm:$0xff] %v328
  %s397 = scalar_lea.vmem [#allocation1], 1
  %398 = vst [vmem:[%s397] ss:$9 sm:$0xff] %v344
  %s399 = scalar_lea.vmem [#allocation1], 2
  %400 = vst [vmem:[%s399] ss:$9 sm:$0xff] %v345
  %v401 = vld [vmem:[#allocation1] sm:$0xff]
  %402 = vst [vmem:[#allocation1] ss:$9 sm:$0xff] %v346
  %403 = vst [vmem:[%s397] ss:$9 sm:$0xff] %v347
  %404 = vst [vmem:[%s399] ss:$9 sm:$0xff] %v348
  %v405 = vld [vmem:[#allocation1] sm:$0xff]
  %406 = vst [vmem:[#allocation1] ss:$9 sm:$0xff] %v349
  %407 = vst [vmem:[%s397] ss:$9 sm:$0xff] %v350
  %408 = vst [vmem:[%s399] ss:$9 sm:$0xff] %v329
  %v409 = vld [vmem:[#allocation1] sm:$0xff]
  %410 = vst [vmem:[#allocation1] ss:$9 sm:$0xff] %v351
  %411 = vst [vmem:[%s397] ss:$9 sm:$0xff] %v352
  %412 = vst [vmem:[%s399] ss:$9 sm:$0xff] %v353
  %v413 = vld [vmem:[#allocation1] sm:$0xff]
  %414 = vst [vmem:[#allocation1] ss:$9 sm:$0xff] %v354
  %415 = vst [vmem:[%s397] ss:$9 sm:$0xff] %v355
  %416 = vst [vmem:[%s399] ss:$9 sm:$0xff] %v356
  %v417 = vld [vmem:[#allocation1] sm:$0xff]
  %418 = vst [vmem:[#allocation1] ss:$9 sm:$0xff] %v357
  %419 = vst [vmem:[%s397] ss:$9 sm:$0xff] %v330
  %420 = vst [vmem:[%s399] ss:$9 sm:$0xff] %v358
  %v421 = vld [vmem:[#allocation1] sm:$0xff]
  %422 = vst [vmem:[#allocation1] ss:$9 sm:$0xff] %v359
  %423 = vst [vmem:[%s397] ss:$9 sm:$0xff] %v360
  %424 = vst [vmem:[%s399] ss:$9 sm:$0xff] %v361
  %v425 = vld [vmem:[#allocation1] sm:$0xff]
  %426 = vst [vmem:[#allocation1] ss:$9 sm:$0xff] %v362
  %427 = vst [vmem:[%s397] ss:$9 sm:$0xff] %v363
  %428 = vst [vmem:[%s399] ss:$9 sm:$0xff] %v364
  %v429 = vld [vmem:[#allocation1] sm:$0xff]
  %430 = vst [vmem:[#allocation1] ss:$9 sm:$0xff] %v331
  %431 = vst [vmem:[%s397] ss:$9 sm:$0xff] %v365
  %432 = vst [vmem:[%s399] ss:$9 sm:$0xff] %v366
  %v433 = vld [vmem:[#allocation1] sm:$0xff]
  %434 = vst [vmem:[#allocation1] ss:$9 sm:$0xff] %v367
  %435 = vst [vmem:[%s397] ss:$9 sm:$0xff] %v368
  %436 = vst [vmem:[%s399] ss:$9 sm:$0xff] %v369
  %v437 = vld [vmem:[#allocation1] sm:$0xff]
  %438 = vst [vmem:[#allocation1] ss:$9 sm:$0xff] %v332
  %439 = vst [vmem:[%s397] ss:$9 sm:$0xff] %v370
  %440 = vst [vmem:[%s399] ss:$9 sm:$0xff] %v371
  %v441 = vld [vmem:[#allocation1] sm:$0xff]
  %442 = vst [vmem:[#allocation1] ss:$9 sm:$0xff] %v372
  %443 = vst [vmem:[%s397] ss:$9 sm:$0xff] %v373
  %444 = vst [vmem:[%s399] ss:$9 sm:$0xff] %v374
  %v445 = vld [vmem:[#allocation1] sm:$0xff]
  %446 = vst [vmem:[#allocation1] ss:$9 sm:$0xff] %v375
  %447 = vst [vmem:[%s397] ss:$9 sm:$0xff] %v376
  %448 = vst [vmem:[%s399] ss:$9 sm:$0xff] %v333
  %v449 = vld [vmem:[#allocation1] sm:$0xff]
  %450 = vst [vmem:[#allocation1] ss:$9 sm:$0xff] %v377
  %451 = vst [vmem:[%s397] ss:$9 sm:$0xff] %v378
  %452 = vst [vmem:[%s399] ss:$9 sm:$0xff] %v379
  %v453 = vld [vmem:[#allocation1] sm:$0xff]
  %454 = vst [vmem:[#allocation1] ss:$9 sm:$0xff] %v380
  %455 = vst [vmem:[%s397] ss:$9 sm:$0xff] %v381
  %456 = vst [vmem:[%s399] ss:$9 sm:$0xff] %v382
  %v457 = vld [vmem:[#allocation1] sm:$0xff]
  %458 = vst [vmem:[#allocation1] ss:$9 sm:$0xff] %v383
  %459 = vst [vmem:[%s397] ss:$9 sm:$0xff] %v334
  %460 = vst [vmem:[%s399] ss:$9 sm:$0xff] %v384
  %v461 = vld [vmem:[#allocation1] sm:$0xff]
  %462 = vst [vmem:[#allocation1] ss:$9 sm:$0xff] %v385
  %463 = vst [vmem:[%s397] ss:$9 sm:$0xff] %v386
  %464 = vst [vmem:[%s399] ss:$9 sm:$0xff] %v387
  %v465 = vld [vmem:[#allocation1] sm:$0xff]
  %466 = vst [vmem:[#allocation1] ss:$9 sm:$0xff] %v388
  %467 = vst [vmem:[%s397] ss:$9 sm:$0xff] %v389
  %468 = vst [vmem:[%s399] ss:$9 sm:$0xff] %v390
  %v469 = vld [vmem:[#allocation1] sm:$0xff]
  %470 = vst [vmem:[#allocation1] ss:$9 sm:$0xff] %v335
  %471 = vst [vmem:[%s397] ss:$9 sm:$0xff] %v391
  %472 = vst [vmem:[%s399] ss:$9 sm:$0xff] %v392
  %v473 = vld [vmem:[#allocation1] sm:$0xff]
  %474 = vst [vmem:[#allocation1] ss:$9 sm:$0xff] %v393
  %475 = vst [vmem:[%s397] ss:$9 sm:$0xff] %v394
  %476 = vst [vmem:[%s399] ss:$9 sm:$0xff] %v395
  %v477 = vld [vmem:[#allocation1] sm:$0xff]
  %vm498 = vcmask 518144
  %v499 = vsel %vm498, %v401, -inf
  %v500 = vrot.slane %v499, 4
  %v501 = vmax.f32 %v499, %v500
  %v502 = vrot.slane %v501, 2
  %v503 = vmax.f32 %v501, %v502
  %v504 = vrot.slane %v503, 1
  %v505 = vmax.f32 %v503, %v504
  %v506 = vsel %vm498, %v405, -inf
  %v507 = vrot.slane %v506, 4
  %v508 = vmax.f32 %v506, %v507
  %v509 = vrot.slane %v508, 2
  %v510 = vmax.f32 %v508, %v509
  %v511 = vrot.slane %v510, 1
  %v512 = vmax.f32 %v510, %v511
  %v513 = vsel %vm498, %v409, -inf
  %v514 = vrot.slane %v513, 4
  %v515 = vmax.f32 %v513, %v514
  %v516 = vrot.slane %v515, 2
  %v517 = vmax.f32 %v515, %v516
  %v518 = vrot.slane %v517, 1
  %v519 = vmax.f32 %v517, %v518
  %v520 = vsel %vm498, %v413, -inf
  %v521 = vrot.slane %v520, 4
  %v522 = vmax.f32 %v520, %v521
  %v523 = vrot.slane %v522, 2
  %v524 = vmax.f32 %v522, %v523
  %v525 = vrot.slane %v524, 1
  %v526 = vmax.f32 %v524, %v525
  %v527 = vsel %vm498, %v417, -inf
  %v528 = vrot.slane %v527, 4
  %v529 = vmax.f32 %v527, %v528
  %v530 = vrot.slane %v529, 2
  %v531 = vmax.f32 %v529, %v530
  %v532 = vrot.slane %v531, 1
  %v533 = vmax.f32 %v531, %v532
  %v534 = vsel %vm498, %v421, -inf
  %v535 = vrot.slane %v534, 4
  %v536 = vmax.f32 %v534, %v535
  %v537 = vrot.slane %v536, 2
  %v538 = vmax.f32 %v536, %v537
  %v539 = vrot.slane %v538, 1
  %v540 = vmax.f32 %v538, %v539
  %v541 = vsel %vm498, %v425, -inf
  %v542 = vrot.slane %v541, 4
  %v543 = vmax.f32 %v541, %v542
  %v544 = vrot.slane %v543, 2
  %v545 = vmax.f32 %v543, %v544
  %v546 = vrot.slane %v545, 1
  %v547 = vmax.f32 %v545, %v546
  %v548 = vsel %vm498, %v429, -inf
  %v549 = vrot.slane %v548, 4
  %v550 = vmax.f32 %v548, %v549
  %v551 = vrot.slane %v550, 2
  %v552 = vmax.f32 %v550, %v551
  %v553 = vrot.slane %v552, 1
  %v554 = vmax.f32 %v552, %v553
  %v555 = vsel %vm498, %v433, -inf
  %v556 = vrot.slane %v555, 4
  %v557 = vmax.f32 %v555, %v556
  %v558 = vrot.slane %v557, 2
  %v559 = vmax.f32 %v557, %v558
  %v560 = vrot.slane %v559, 1
  %v561 = vmax.f32 %v559, %v560
  %v562 = vsel %vm498, %v437, -inf
  %v563 = vrot.slane %v562, 4
  %v564 = vmax.f32 %v562, %v563
  %v565 = vrot.slane %v564, 2
  %v566 = vmax.f32 %v564, %v565
  %v567 = vrot.slane %v566, 1
  %v568 = vmax.f32 %v566, %v567
  %v569 = vsel %vm498, %v441, -inf
  %v570 = vrot.slane %v569, 4
  %v571 = vmax.f32 %v569, %v570
  %v572 = vrot.slane %v571, 2
  %v573 = vmax.f32 %v571, %v572
  %v574 = vrot.slane %v573, 1
  %v575 = vmax.f32 %v573, %v574
  %v576 = vsel %vm498, %v445, -inf
  %v577 = vrot.slane %v576, 4
  %v578 = vmax.f32 %v576, %v577
  %v579 = vrot.slane %v578, 2
  %v580 = vmax.f32 %v578, %v579
  %v581 = vrot.slane %v580, 1
  %v582 = vmax.f32 %v580, %v581
  %v583 = vsel %vm498, %v449, -inf
  %v584 = vrot.slane %v583, 4
  %v585 = vmax.f32 %v583, %v584
  %v586 = vrot.slane %v585, 2
  %v587 = vmax.f32 %v585, %v586
  %v588 = vrot.slane %v587, 1
  %v589 = vmax.f32 %v587, %v588
  %v590 = vsel %vm498, %v453, -inf
  %v591 = vrot.slane %v590, 4
  %v592 = vmax.f32 %v590, %v591
  %v593 = vrot.slane %v592, 2
  %v594 = vmax.f32 %v592, %v593
  %v595 = vrot.slane %v594, 1
  %v596 = vmax.f32 %v594, %v595
  %v597 = vsel %vm498, %v457, -inf
  %v598 = vrot.slane %v597, 4
  %v599 = vmax.f32 %v597, %v598
  %v600 = vrot.slane %v599, 2
  %v601 = vmax.f32 %v599, %v600
  %v602 = vrot.slane %v601, 1
  %v603 = vmax.f32 %v601, %v602
  %v604 = vsel %vm498, %v461, -inf
  %v605 = vrot.slane %v604, 4
  %v606 = vmax.f32 %v604, %v605
  %v607 = vrot.slane %v606, 2
  %v608 = vmax.f32 %v606, %v607
  %v609 = vrot.slane %v608, 1
  %v610 = vmax.f32 %v608, %v609
  %v611 = vsel %vm498, %v465, -inf
  %v612 = vrot.slane %v611, 4
  %v613 = vmax.f32 %v611, %v612
  %v614 = vrot.slane %v613, 2
  %v615 = vmax.f32 %v613, %v614
  %v616 = vrot.slane %v615, 1
  %v617 = vmax.f32 %v615, %v616
  %v618 = vsel %vm498, %v469, -inf
  %v619 = vrot.slane %v618, 4
  %v620 = vmax.f32 %v618, %v619
  %v621 = vrot.slane %v620, 2
  %v622 = vmax.f32 %v620, %v621
  %v623 = vrot.slane %v622, 1
  %v624 = vmax.f32 %v622, %v623
  %v625 = vsel %vm498, %v473, -inf
  %v626 = vrot.slane %v625, 4
  %v627 = vmax.f32 %v625, %v626
  %v628 = vrot.slane %v627, 2
  %v629 = vmax.f32 %v627, %v628
  %v630 = vrot.slane %v629, 1
  %v631 = vmax.f32 %v629, %v630
  %v632 = vsel %vm498, %v477, -inf
  %v633 = vrot.slane %v632, 4
  %v634 = vmax.f32 %v632, %v633
  %v635 = vrot.slane %v634, 2
  %v636 = vmax.f32 %v634, %v635
  %v637 = vrot.slane %v636, 1
  %v638 = vmax.f32 %v636, %v637
  %vm655 = vcmask 1041409
  %v656 = vsel %vm655, %v512, %v505
  %vm657 = vcmask 1042434
  %v658 = vsel %vm657, %v519, %v656
  %vm659 = vcmask 1043459
  %v660 = vsel %vm659, %v526, %v658
  %vm661 = vcmask 1044484
  %v662 = vsel %vm661, %v533, %v660
  %vm663 = vcmask 1045509
  %v664 = vsel %vm663, %v540, %v662
  %vm665 = vcmask 1046534
  %v666 = vsel %vm665, %v547, %v664
  %vm667 = vcmask 1047559
  %v668 = vsel %vm667, %v554, %v666
  %v669 = vsel %vm655, %v582, %v575
  %v670 = vsel %vm657, %v589, %v669
  %v671 = vsel %vm659, %v596, %v670
  %v672 = vsel %vm661, %v603, %v671
  %v673 = vsel %vm663, %v610, %v672
  %v674 = vsel %vm665, %v617, %v673
  %v675 = vsel %vm667, %v624, %v674
  %v680 = vsel %vm655, %v519, %v512
  %v681 = vsel %vm657, %v526, %v680
  %v682 = vsel %vm659, %v533, %v681
  %v683 = vsel %vm661, %v540, %v682
  %v684 = vsel %vm663, %v547, %v683
  %v685 = vsel %vm665, %v554, %v684
  %v686 = vsel %vm667, %v561, %v685
  %v687 = vsel %vm655, %v589, %v582
  %v688 = vsel %vm657, %v596, %v687
  %v689 = vsel %vm659, %v603, %v688
  %v690 = vsel %vm661, %v610, %v689
  %v691 = vsel %vm663, %v617, %v690
  %v692 = vsel %vm665, %v624, %v691
  %v693 = vsel %vm667, %v631, %v692
  %694 = vrot.lane.b32.xlu0 %v686, 64
  %v695 = vpop.permute.xlu0 %694
  %696 = vrot.lane.b32.xlu0 %v693, 64
  %v697 = vpop.permute.xlu0 %696
  %v702 = vsel %vm655, %v526, %v519
  %v703 = vsel %vm657, %v533, %v702
  %v704 = vsel %vm659, %v540, %v703
  %v705 = vsel %vm661, %v547, %v704
  %v706 = vsel %vm663, %v554, %v705
  %v707 = vsel %vm665, %v561, %v706
  %v708 = vsel %vm667, %v568, %v707
  %v709 = vsel %vm655, %v596, %v589
  %v710 = vsel %vm657, %v603, %v709
  %v711 = vsel %vm659, %v610, %v710
  %v712 = vsel %vm661, %v617, %v711
  %v713 = vsel %vm663, %v624, %v712
  %v714 = vsel %vm665, %v631, %v713
  %v715 = vsel %vm667, %v638, %v714
  %v716 = vsel %vm240, %v668, %v695
  %v717 = vsel %vm240, %v675, %v697
  %v718 = vld [vmem:[%s3] sm:$0xff]
  %v719 = vld [vmem:[%s3 + $0x8] sm:$0xff]
  %v720 = vld [vmem:[%s3 + $0x10] sm:$0xff]
  %v721 = vld [vmem:[%s3 + $0x18] sm:$0xff]
  %v722 = vld [vmem:[%s3 + $0x20] sm:$0xff]
  %v723 = vld [vmem:[%s3 + $0x28] sm:$0xff]
  %v724 = vld [vmem:[%s3 + $0x30] sm:$0xff]
  %v725 = vld [vmem:[%s3 + $0x38] sm:$0xff]
  %v726 = vld [vmem:[%s3 + $0x40] sm:$0xff]
  %v727 = vld [vmem:[%s3 + $0x48] sm:$0xff]
  %v728 = vld [vmem:[%s3 + $0x50] sm:$0xff]
  %v729 = vld [vmem:[%s3 + $0x58] sm:$0xff]
  %v730 = vld [vmem:[%s3 + $0x60] sm:$0xff]
  %v731 = vld [vmem:[%s3 + $0x68] sm:$0xff]
  %v732 = vld [vmem:[%s3 + $0x70] sm:$0xff]
  %v733 = vld [vmem:[%s3 + $0x78] sm:$0xff]
  %v734 = vld [vmem:[%s3 + $0x80] sm:$0xff]
  %v735 = vld [vmem:[%s3 + $0x88] sm:$0xff]
  %v736 = vld [vmem:[%s3 + $0x90] sm:$0xff]
  %v737 = vld [vmem:[%s3 + $0x98] sm:$0xff]
  %v738 = vld [vmem:[%s3 + $0xa0] sm:$0xff]
  %v739 = vld [vmem:[%s3 + $0xa8] sm:$0xff]
  %v740 = vld [vmem:[%s3 + $0xb0] sm:$0xff]
  %v741 = vld [vmem:[%s3 + $0xb8] sm:$0xff]
  %v742 = vperm.slane %v23, 2
  %v743 = vsel %vm240, %v708, 0
  %v745 = vsel %vm240, %v715, 0
  %747 = vmatpush.msra.mxu0 %v733
  %748 = vmatpush.msra.mxu0 %v732
  %749 = vmatpush.msra.mxu0 %v731
  %750 = vmatpush.msra.mxu0 %v730
  %751 = vmatpush.msra.mxu0 %v729
  %752 = vmatpush.msra.mxu0 %v728
  %753 = vmatpush.msra.mxu0 %v727
  %754 = vmatpush.msra.mxu0 %v726
  %755 = vmatpush.msra.mxu0 %v725
  %756 = vmatpush.msra.mxu0 %v724
  %757 = vmatpush.msra.mxu0 %v723
  %758 = vmatpush.msra.mxu0 %v722
  %759 = vmatpush.msra.mxu0 %v721
  %760 = vmatpush.msra.mxu0 %v720
  %761 = vmatpush.msra.mxu0 %v719
  %762 = vmatpush.msra.mxu0 %v718
  %763 = vmatmul.f32.gmra.mxu0 %v716
  %v764 = vpop.f32.mrf.mxu0
  %v765 = vadd.f32 %v742, %v764
  %766 = vmatmul.f32.gmra.mxu0 %v717
  %v767 = vpop.f32.mrf.mxu0
  %v768 = vadd.f32 %v742, %v767
  %769 = vdwg.mxu0
  %770 = vmatpush.msra.mxu0 0.0
  %771 = vmatpush.msra.mxu0 0.0
  %772 = vmatpush.msra.mxu0 0.0
  %773 = vmatpush.msra.mxu0 0.0
  %774 = vmatpush.msra.mxu0 0.0
  %775 = vmatpush.msra.mxu0 0.0
  %776 = vmatpush.msra.mxu0 0.0
  %777 = vmatpush.msra.mxu0 0.0
  %778 = vmatpush.msra.mxu0 %v741
  %779 = vmatpush.msra.mxu0 %v740
  %780 = vmatpush.msra.mxu0 %v739
  %781 = vmatpush.msra.mxu0 %v738
  %782 = vmatpush.msra.mxu0 %v737
  %783 = vmatpush.msra.mxu0 %v736
  %784 = vmatpush.msra.mxu0 %v735
  %785 = vmatpush.msra.mxu0 %v734
  %786 = vmatmul.f32.gmra.mxu0 %v743
  %v787 = vpop.f32.mrf.mxu0
  %v788 = vadd.f32 %v765, %v787
  %789 = vmatmul.f32.gmra.mxu0 %v745
  %v790 = vpop.f32.mrf.mxu0
  %v791 = vadd.f32 %v768, %v790
  %792 = vdwg.mxu0
  %v793 = vmax.f32 %v788, 0.0
  %v794 = vmax.f32 %v791, 0.0
  %v797 = vrot.slane %v793, 1
  %v798 = vrot.slane %v794, 1
  %v801 = vmax.f32 %v793, %v797
  %v802 = vmax.f32 %v794, %v798
  %v803 = vrot.slane %v793, 2
  %v804 = vrot.slane %v794, 2
  %v807 = vmax.f32 %v801, %v803
  %v808 = vmax.f32 %v802, %v804
  %v809 = vld [vmem:[%s5] sm:$0x7]
  %v810 = vmul.f32 %v807, %v809
  %v811 = vmul.f32 %v808, %v809
  %vm812 = vcmask 1042432
  %v813 = vsel %vm812, %v810, 0.0
  %814 = vadd.xlane.f32.xlu0 %v813
  %v815 = vpop.xlane.xlu0 %814
  %v816 = vsel %vm812, %v811, 0.0
  %817 = vadd.xlane.f32.xlu0 %v816
  %v818 = vpop.xlane.xlu0 %817
  %v821 = vlaneseq
  %v822 = vand.u32 %v821, 127
  %v823 = vperm.slane %v815, %v822
  %v824 = vperm.slane %v818, %v822
  %v825 = vsel %vm655, %v824, %v823
  %vm827 = vcmask 17408
  %v828 = vsel %vm827, %v825, 0.0
  %829 = vadd.xlane.f32.xlu0 %v828
  %v830 = vpop.xlane.xlu0 %829
  %vm831 = vcmask 1024
  %832 = vst.msk [vmem:[%s6] sm:$0x3] %vm831, %v830
  // Predicated region
  $region26: #{cnn_forward.1} parent=0 // pred_check
    _
  $region27: #{cnn_forward.1} parent=0 // pred_check_branch
    %834 = sbr.rel (0) target = $region29
  $region28: #{cnn_forward.1} parent=0 // pred_region
    _
  $region29: #{cnn_forward.1} parent=0 // pred_fallthru
    _
  // Predicated region
  $region30: #{cnn_forward.1} parent=0 // pred_check
    _
  $region31: #{cnn_forward.1} parent=0 // pred_check_branch
    %836 = sbr.rel (0) target = $region33
  $region32: #{cnn_forward.1} parent=0 // pred_region
    _
  $region33: #{cnn_forward.1} parent=0 // pred_fallthru
    _

</llo_original>
